<compile_context>
chip_gen: v7x
topology: tpu7x:2x2x1
jax: 0.10.0
libtpu: 0.0.40
codegen_flags: <defaults>
</compile_context>

<pallas_src>
import functools
from typing import NamedTuple

import jax
import jax.numpy as jnp
from jax import lax
from jax.experimental import pallas as pl
from jax.experimental.pallas import tpu as pltpu


def _round_up(x, m):
    return (x + m - 1) // m * m


def _vmem_capacity_bytes():
    try:
        return int(getattr(pltpu.get_tpu_info(), "vmem_capacity_bytes"))
    except Exception:
        return 64 * 1024 * 1024          # conservative default (v7x per-core VMEM)


class MoEConfig(NamedTuple):
    dim: int
    inter: int
    n_routed: int
    n_shared: int
    n_experts: int                        # routed + shared
    d_pad: int
    i_pad: int
    tile_i: int


# ----------------------------- tile selection ------------------------------- #

def _select_inter_tile(d_pad, i_pad, vmem_cap):
    """Largest I-tile whose double-buffered (w1|w3)+w2 bf16 blocks fit VMEM after
    reserving room for x / out / accumulator at the worst-case token tile."""
    big_vmem = vmem_cap >= 100 * 1024 * 1024
    t_tok_worst = 512 if big_vmem else 256
    budget = int(vmem_cap * 0.85) - 16 * t_tok_worst * d_pad - (2 << 20)
    for t_i in (512, 256, 128):
        if t_i <= i_pad and i_pad % t_i == 0 and 12 * t_i * d_pad <= budget:
            return t_i
    return min(128, i_pad)


def _select_token_tile(T, vmem_cap):
    big_vmem = vmem_cap >= 100 * 1024 * 1024
    # v5e/v6e (128 MiB): larger token tiles raise arithmetic intensity toward the
    # ridge; v7x (64 MiB): 256 keeps the tI=256 weight tiles resident.
    target = 512 if big_vmem else 256
    if T >= 2 * target:
        t_t = target
    elif T > 256:
        t_t = _round_up((T + 1) // 2, 128)   # >=2 parallel tiles for v7x's 2 cores
    else:
        t_t = _round_up(max(T, 16), 16)
    return t_t, _round_up(T, t_t)


# ------------------------------ Pallas kernel ------------------------------- #

def _silu_f32(h):
    # Divide goes to the EUP slot (approx reciprocal) instead of a VALU Newton chain.
    if hasattr(pl, "reciprocal"):
        return h * pl.reciprocal(1.0 + jnp.exp(-h), approx=True)
    return h * jax.nn.sigmoid(h)


def _moe_kernel(nact_ref,              # SMEM (1,)    int32: number of active experts
                ids_ref,               # SMEM (Etot,) int32: active expert ids (tail repeats last)
                x_ref,                 # (tT, Dp)     bf16
                w13_ref,               # (1, 2*tI, Dp) bf16  (w1 tile ; w3 tile packed)
                w2_ref,                # (1, Dp, tI)  bf16
                r_ref,                 # (1, tT, 1)   f32 routing weight column of this expert
                o_ref,                 # (tT, Dp)     output dtype
                acc_ref):              # VMEM scratch (tT, Dp) f32
    e = pl.program_id(1)
    i = pl.program_id(2)

    @pl.when((e == 0) & (i == 0))
    def _init():
        acc_ref[...] = jnp.zeros_like(acc_ref)

    # Only active experts compute.  Inactive tail slots also skip the weight DMA
    # because their index_map repeats the previous block index (block revisit).
    # NOTE: relies on top-k softmax weights being strictly positive; an expert
    # with an exactly-zero weight is skipped, which is harmless (contribution 0).
    @pl.when(e < nact_ref[0])
    def _compute():
        t_i = w2_ref.shape[2]                           # static I-tile size
        x = x_ref[...]                                  # (tT, Dp)
        w13 = w13_ref[0]                                # (2*tI, Dp)
        w2 = w2_ref[0]                                  # (Dp, tI)
        dn = (((1,), (1,)), ((), ()))                   # contract last dims (no .T relayout)
        hh = lax.dot_general(x, w13, dn, preferred_element_type=jnp.float32)  # (tT, 2*tI)
        h1 = hh[:, :t_i]
        h3 = hh[:, t_i:]
        h = _silu_f32(h1) * h3                          # SwiGLU intermediate, f32
        r = r_ref[0]                                    # (tT, 1) routing weight
        hb = (h * r).astype(jnp.bfloat16)
        acc_ref[...] += lax.dot_general(hb, w2, dn, preferred_element_type=jnp.float32)

    @pl.when((e == pl.num_programs(1) - 1) & (i == pl.num_programs(2) - 1))
    def _finalize():
        o_ref[...] = acc_ref[...].astype(o_ref.dtype)


# --------------------------- one-time weight prep ---------------------------- #

def prepare_moe_params(params):
    """Hoisted out of the forward pass (per perf review): stack shared experts as
    extra experts, pad to MXU tiles, cast to bf16, pack w1/w3 per I-tile."""
    E, I, D = params["w1"].shape
    SI = params["sw1"].shape[0]
    if SI % I != 0:
        raise ValueError("shared inter dim must be an exact multiple of the routed inter dim")
    n_shared = SI // I
    n_experts = E + n_shared

    w1_all = jnp.concatenate([params["w1"], params["sw1"].reshape(n_shared, I, D)], axis=0)
    w3_all = jnp.concatenate([params["w3"], params["sw3"].reshape(n_shared, I, D)], axis=0)
    sw2 = jnp.transpose(params["sw2"].reshape(D, n_shared, I), (1, 0, 2))   # (n_shared, D, I)
    w2_all = jnp.concatenate([params["w2"], sw2], axis=0)                   # (Etot, D, I)

    d_pad = _round_up(D, 128)
    i_pad = _round_up(I, 128)
    tile_i = _select_inter_tile(d_pad, i_pad, _vmem_capacity_bytes())
    n_i = i_pad // tile_i

    w1p = jnp.zeros((n_experts, i_pad, d_pad), jnp.bfloat16).at[:, :I, :D].set(
        w1_all.astype(jnp.bfloat16))
    w3p = jnp.zeros((n_experts, i_pad, d_pad), jnp.bfloat16).at[:, :I, :D].set(
        w3_all.astype(jnp.bfloat16))
    # Pack per I-tile as [w1_tile ; w3_tile] -> one DMA stream + one MXU pass per step.
    w13 = jnp.concatenate(
        [w1p.reshape(n_experts, n_i, tile_i, d_pad),
         w3p.reshape(n_experts, n_i, tile_i, d_pad)], axis=2
    ).reshape(n_experts, 2 * i_pad, d_pad)
    w2p = jnp.zeros((n_experts, d_pad, i_pad), jnp.bfloat16).at[:, :D, :I].set(
        w2_all.astype(jnp.bfloat16))

    weights = {"wg": params["wg"].astype(jnp.float32), "w13": w13, "w2": w2p}
    cfg = MoEConfig(dim=D, inter=I, n_routed=E, n_shared=n_shared, n_experts=n_experts,
                    d_pad=d_pad, i_pad=i_pad, tile_i=tile_i)
    return weights, cfg


# ------------------------------ forward wrapper ------------------------------ #

def _gate_route(xt, wg, topk):
    """Tiny gate GEMM + top-k + dense route table in plain JAX."""
    logits = jnp.dot(xt.astype(jnp.float32), wg.astype(jnp.float32).T)
    probs = jax.nn.softmax(logits, axis=-1)
    vals, idx = lax.top_k(probs, topk)
    T, E = probs.shape
    return jnp.zeros((T, E), jnp.float32).at[jnp.arange(T)[:, None], idx].add(vals)


@functools.partial(jax.jit, static_argnames=("topk", "cfg"))
def moe_forward(x, weights, topk, cfg):
    orig_shape = x.shape
    orig_dtype = x.dtype
    D, Etot = cfg.dim, cfg.n_experts
    Dp, Ip, tI = cfg.d_pad, cfg.i_pad, cfg.tile_i
    nI = Ip // tI

    xt = x.reshape(-1, D)
    T = xt.shape[0]

    # Gate + routing (routed experts); shared experts get weight 1.0.
    route = _gate_route(xt, weights["wg"], topk)                             # (T, E)
    route_full = jnp.concatenate(
        [route, jnp.ones((T, cfg.n_shared), jnp.float32)], axis=1)          # (T, Etot)

    # Active-expert compaction: active ids first (ascending), tail repeats last.
    counts = jnp.sum(route_full > 0.0, axis=0).astype(jnp.int32)             # (Etot,)
    active_mask = counts > 0
    n_active = jnp.sum(active_mask.astype(jnp.int32))
    sort_ids = jnp.argsort(jnp.where(active_mask, 0, Etot) + jnp.arange(Etot)).astype(jnp.int32)
    last_active = sort_ids[jnp.maximum(n_active - 1, 0)]
    active_ids = jnp.where(jnp.arange(Etot) < n_active, sort_ids, last_active).astype(jnp.int32)
    n_active_arr = jnp.reshape(n_active, (1,)).astype(jnp.int32)

    # Tiling / padding.
    vmem_cap = _vmem_capacity_bytes()
    tT, Tp = _select_token_tile(T, vmem_cap)
    xp = jnp.zeros((Tp, Dp), jnp.bfloat16).at[:T, :D].set(xt.astype(jnp.bfloat16))
    # Routing weights transposed to (Etot, Tp, 1): kernel gets a ready (tT, 1) column.
    routeT = jnp.zeros((Etot, Tp, 1), jnp.float32).at[:, :T, 0].set(route_full.T)

    grid = (Tp // tT, Etot, nI)

    def _active(e, na):
        return (e < na[0]).astype(jnp.int32)

    def x_map(t, e, i, na, ids):
        return t, 0

    def w13_map(t, e, i, na, ids):
        act = _active(e, na)
        # Inactive tail slots repeat the last active expert's LAST I-tile block ->
        # block revisit -> no weight DMA for inactive experts.
        return ids[e], i * act + (nI - 1) * (1 - act), 0

    def w2_map(t, e, i, na, ids):
        act = _active(e, na)
        return ids[e], 0, i * act + (nI - 1) * (1 - act)

    def r_map(t, e, i, na, ids):
        return ids[e], t, 0

    def o_map(t, e, i, na, ids):
        return t, 0

    # VMEM budget computed from the actual tile sums (double-buffered BlockSpecs).
    out_bytes = jnp.dtype(orig_dtype).itemsize
    vmem_need = (12 * tI * Dp                 # (w1|w3) + w2 bf16, double-buffered
                 + 2 * tT * Dp * 2            # x bf16, double-buffered
                 + 2 * tT * Dp * out_bytes    # output, double-buffered
                 + tT * Dp * 4                # f32 accumulator scratch
                 + 2 * tT * 128 * 4           # route column (lane-padded), double-buffered
                 + (4 << 20))                 # headroom
    vmem_limit = int(min(max(vmem_need, 32 << 20), int(vmem_cap * 0.9)))

    out = pl.pallas_call(
        _moe_kernel,
        out_shape=jax.ShapeDtypeStruct((Tp, Dp), orig_dtype),
        grid_spec=pltpu.PrefetchScalarGridSpec(
            num_scalar_prefetch=2,
            grid=grid,
            in_specs=[
                pl.BlockSpec((tT, Dp), x_map),          # x
                pl.BlockSpec((1, 2 * tI, Dp), w13_map),  # packed w1|w3
                pl.BlockSpec((1, Dp, tI), w2_map),       # w2
                pl.BlockSpec((1, tT, 1), r_map),         # routing weight column
            ],
            out_specs=pl.BlockSpec((tT, Dp), o_map),
            scratch_shapes=[pltpu.VMEM((tT, Dp), jnp.float32)],
        ),
        compiler_params=pltpu.CompilerParams(
            dimension_semantics=("parallel", "arbitrary", "arbitrary"),
            vmem_limit_bytes=vmem_limit,
        ),
    )(n_active_arr, active_ids, xp, weights["w13"], weights["w2"], routeT)

    return out[:T, :D].reshape(orig_shape).astype(orig_dtype)


# ------------------------------ references ----------------------------------- #

def ref_forward_f32(x, params, topk):
    """Exact fp32 module semantics (F.linear path)."""
    shape = x.shape
    D = shape[-1]
    xt = x.reshape(-1, D).astype(jnp.float32)
    route = _gate_route(xt, params["wg"], topk)
    E = params["w1"].shape[0]

    def expert(w1, w3, w2):
        h = jax.nn.silu(xt @ w1.T) * (xt @ w3.T)
        return h @ w2.T

    y = jnp.zeros_like(xt)
    for e in range(E):
        y = y + route[:, e:e + 1] * expert(params["w1"][e], params["w3"][e], params["w2"][e])
    y = y + expert(params["sw1"], params["sw3"], params["sw2"])
    return y.reshape(shape).astype(x.dtype)


def ref_forward_bf16(x, params, topk):
    """Reference mirroring kernel numerics (bf16 MXU inputs, f32 accumulation,
    routing weight folded into h before the w2 matmul)."""
    shape = x.shape
    D = shape[-1]
    xt = x.reshape(-1, D)
    T = xt.shape[0]
    route = _gate_route(xt, params["wg"], topk)
    E = params["w1"].shape[0]
    xb = xt.astype(jnp.bfloat16)
    dn = (((1,), (1,)), ((), ()))

    def expert(r, w1, w3, w2):
        h1 = lax.dot_general(xb, w1.astype(jnp.bfloat16), dn, preferred_element_type=jnp.float32)
        h3 = lax.dot_general(xb, w3.astype(jnp.bfloat16), dn, preferred_element_type=jnp.float32)
        h = (h1 * jax.nn.sigmoid(h1)) * h3
        hb = (h * r).astype(jnp.bfloat16)
        return lax.dot_general(hb, w2.astype(jnp.bfloat16), dn, preferred_element_type=jnp.float32)

    y = jnp.zeros((T, D), jnp.float32)
    for e in range(E):
        y = y + expert(route[:, e:e + 1], params["w1"][e], params["w3"][e], params["w2"][e])
    y = y + expert(jnp.ones((T, 1), jnp.float32), params["sw1"], params["sw3"], params["sw2"])
    return y.reshape(shape).astype(x.dtype)


# -------------------------------- main ---------------------------------------- #

if __name__ == "__main__":
    B, S = 2, 8
    DIM = 32
    MOE_INTER = 64
    N_EXPERTS = 8
    TOPK = 2
    N_SHARED = 2
    SHARED_INTER = N_SHARED * MOE_INTER

    key = jax.random.PRNGKey(0)
    ks = jax.random.split(key, 8)

    params = {
        # Gate.weight = randn(E, dim)
        "wg": jax.random.normal(ks[0], (N_EXPERTS, DIM), jnp.float32),
        # Expert Linears: randn(out, in) * in**-0.5
        "w1": jax.random.normal(ks[1], (N_EXPERTS, MOE_INTER, DIM), jnp.float32) * DIM ** -0.5,
        "w3": jax.random.normal(ks[2], (N_EXPERTS, MOE_INTER, DIM), jnp.float32) * DIM ** -0.5,
        "w2": jax.random.normal(ks[3], (N_EXPERTS, DIM, MOE_INTER), jnp.float32) * MOE_INTER ** -0.5,
        # Shared experts MLP
        "sw1": jax.random.normal(ks[4], (SHARED_INTER, DIM), jnp.float32) * DIM ** -0.5,
        "sw3": jax.random.normal(ks[5], (SHARED_INTER, DIM), jnp.float32) * DIM ** -0.5,
        "sw2": jax.random.normal(ks[6], (DIM, SHARED_INTER), jnp.float32) * SHARED_INTER ** -0.5,
    }

    x = jax.random.normal(ks[7], (B, S, DIM), jnp.float32)

    # One-time weight preparation (hoisted out of the per-call forward).
    weights, cfg = prepare_moe_params(params)

    out = jax.block_until_ready(moe_forward(x, weights, topk=TOPK, cfg=cfg))

    ref32 = ref_forward_f32(x, params, TOPK)
    refbf = ref_forward_bf16(x, params, TOPK)

    assert out.shape == x.shape and out.dtype == x.dtype
    # Tight check vs. a reference mirroring kernel numerics (bf16 MXU inputs; small
    # extra slack for the EUP approx-reciprocal sigmoid).
    assert jnp.allclose(out, refbf, rtol=2e-2, atol=2e-2), (
        f"bf16-path max err {jnp.max(jnp.abs(out - refbf))}")
    # Loose check vs. exact fp32 semantics (bf16 MXU inputs -> ~1e-2 level error).
    assert jnp.allclose(out, ref32, rtol=1e-1, atol=1e-1), (
        f"fp32 max err {jnp.max(jnp.abs(out - ref32))}")

    print("KERNEL_OK")
</pallas_src>

<mosaic_0001>
module attributes {stable_mosaic.version = 11 : i64} {
  func.func private @main(%arg0: i32) attributes {dimension_semantics = [#tpu.dimension_semantics<core_parallel>], iteration_bounds = array<i64: 2>, tpu.core_type = #tpu.core_type<sc_scalar_subcore>, window_params = []} {
    return
  }
}

module attributes {stable_mosaic.version = 11 : i64} {
  func.func private @main(%arg0: i32) attributes {dimension_semantics = [#tpu.dimension_semantics<core_parallel>], iteration_bounds = array<i64: 2>, tpu.core_type = #tpu.core_type<sc_scalar_subcore>, window_params = []} {
    return
  }
}

module attributes {stable_mosaic.version = 11 : i64} {
  func.func @_moe_kernel(%arg0: i32, %arg1: i32, %arg2: i32, %arg3: memref<1xi32, #tpu.memory_space<smem>>, %arg4: memref<10xi32, #tpu.memory_space<smem>>, %arg5: memref<16x128xbf16, #tpu.memory_space<vmem>>, %arg6: memref<1x256x128xbf16, #tpu.memory_space<vmem>>, %arg7: memref<1x128x128xbf16, #tpu.memory_space<vmem>>, %arg8: memref<1x16x1xf32, #tpu.memory_space<vmem>>, %arg9: memref<16x128xf32, #tpu.memory_space<vmem>>, %arg10: memref<16x128xf32, #tpu.memory_space<vmem>>) attributes {dimension_semantics = [#tpu.dimension_semantics<parallel>, #tpu.dimension_semantics<arbitrary>, #tpu.dimension_semantics<arbitrary>], iteration_bounds = array<i64: 1, 10, 1>, scalar_prefetch = 2 : i64, scratch_operands = 1 : i64, tpu.core_type = #tpu.core_type<tc>, window_params = [{transform_indices = @transform_0, window_bounds = array<i64: 16, 128>}, {transform_indices = @transform_1, window_bounds = array<i64: 1, 256, 128>}, {transform_indices = @transform_2, window_bounds = array<i64: 1, 128, 128>}, {transform_indices = @transform_3, window_bounds = array<i64: 1, 16, 1>}, {transform_indices = @transform_4, window_bounds = array<i64: 16, 128>}]} {
    %c0_i32 = arith.constant 0 : i32
    %0 = arith.cmpi eq, %arg1, %c0_i32 : i32
    %c0_i32_0 = arith.constant 0 : i32
    %1 = arith.cmpi eq, %arg2, %c0_i32_0 : i32
    %2 = arith.andi %0, %1 : i1
    %3 = arith.extui %2 : i1 to i32
    %c0_i32_1 = arith.constant 0 : i32
    %4 = arith.cmpi ne, %3, %c0_i32_1 : i32
    scf.if %4 {
      %cst = arith.constant 0.000000e+00 : f32
      %14 = vector.broadcast %cst : f32 to vector<16x128xf32>
      %c0_5 = arith.constant 0 : index
      %c0_6 = arith.constant 0 : index
      %15 = vector.load %arg10[%c0_5, %c0_6] : memref<16x128xf32, #tpu.memory_space<vmem>>, vector<16x128xf32>
      tpu.vector_store %arg10[%c0_5, %c0_6], %14 {strides = array<i32>} : memref<16x128xf32, #tpu.memory_space<vmem>>, vector<16x128xf32>,
    } else {
    }
    %c0 = arith.constant 0 : index
    %5 = memref.load %arg3[%c0] : memref<1xi32, #tpu.memory_space<smem>>
    %6 = arith.cmpi slt, %arg1, %5 : i32
    %7 = arith.extui %6 : i1 to i32
    %c0_i32_2 = arith.constant 0 : i32
    %8 = arith.cmpi ne, %7, %c0_i32_2 : i32
    scf.if %8 {
      %c0_5 = arith.constant 0 : index
      %c0_6 = arith.constant 0 : index
      %14 = vector.load %arg5[%c0_5, %c0_6] : memref<16x128xbf16, #tpu.memory_space<vmem>>, vector<16x128xbf16>
      %c0_7 = arith.constant 0 : index
      %c0_8 = arith.constant 0 : index
      %c0_9 = arith.constant 0 : index
      %15 = vector.load %arg6[%c0_7, %c0_8, %c0_9] : memref<1x256x128xbf16, #tpu.memory_space<vmem>>, vector<1x256x128xbf16>
      %16 = vector.shape_cast %15 : vector<1x256x128xbf16> to vector<256x128xbf16>
      %c0_10 = arith.constant 0 : index
      %c0_11 = arith.constant 0 : index
      %c0_12 = arith.constant 0 : index
      %17 = vector.load %arg7[%c0_10, %c0_11, %c0_12] : memref<1x128x128xbf16, #tpu.memory_space<vmem>>, vector<1x128x128xbf16>
      %18 = vector.shape_cast %17 : vector<1x128x128xbf16> to vector<128x128xbf16>
      %cst = arith.constant dense<0.000000e+00> : vector<16x256xf32>
      %19 = tpu.matmul %14, %16, %cst {dimension_numbers = #tpu.dot_dimension_numbers<[1], [1], [0], [0], [0, 0, 1, 0], [], []>} : vector<16x128xbf16>, vector<256x128xbf16>, vector<16x256xf32> -> vector<16x256xf32>
      %20 = vector.extract_strided_slice %19 {offsets = [0, 0], sizes = [16, 128], strides = [1, 1]} : vector<16x256xf32> to vector<16x128xf32>
      %21 = vector.extract_strided_slice %19 {offsets = [0, 128], sizes = [16, 128], strides = [1, 1]} : vector<16x256xf32> to vector<16x128xf32>
      %cst_13 = arith.constant 0.000000e+00 : f32
      %22 = vector.broadcast %cst_13 : f32 to vector<16x128xf32>
      %23 = arith.subf %22, %20 : vector<16x128xf32>
      %24 = math.exp %23 : vector<16x128xf32>
      %cst_14 = arith.constant 1.000000e+00 : f32
      %25 = vector.broadcast %cst_14 : f32 to vector<16x128xf32>
      %26 = arith.addf %25, %24 : vector<16x128xf32>
      %27 = tpu.reciprocal %26 {approx = true} : vector<16x128xf32> -> vector<16x128xf32>
      %28 = arith.mulf %20, %27 : vector<16x128xf32>
      %29 = arith.mulf %28, %21 : vector<16x128xf32>
      %c0_15 = arith.constant 0 : index
      %c0_16 = arith.constant 0 : index
      %c0_17 = arith.constant 0 : index
      %30 = vector.load %arg8[%c0_15, %c0_16, %c0_17] : memref<1x16x1xf32, #tpu.memory_space<vmem>>, vector<1x16x1xf32>
      %31 = vector.shape_cast %30 : vector<1x16x1xf32> to vector<16x1xf32>
      %32 = vector.broadcast %31 : vector<16x1xf32> to vector<16x128xf32>
      %33 = arith.mulf %29, %32 : vector<16x128xf32>
      %34 = arith.truncf %33 : vector<16x128xf32> to vector<16x128xbf16>
      %c0_18 = arith.constant 0 : index
      %c0_19 = arith.constant 0 : index
      %35 = vector.load %arg10[%c0_18, %c0_19] : memref<16x128xf32, #tpu.memory_space<vmem>>, vector<16x128xf32>
      %cst_20 = arith.constant dense<0.000000e+00> : vector<16x128xf32>
      %36 = tpu.matmul %34, %18, %cst_20 {dimension_numbers = #tpu.dot_dimension_numbers<[1], [1], [0], [0], [0, 0, 1, 0], [], []>} : vector<16x128xbf16>, vector<128x128xbf16>, vector<16x128xf32> -> vector<16x128xf32>
      %37 = arith.addf %35, %36 : vector<16x128xf32>
      %c0_21 = arith.constant 0 : index
      %c0_22 = arith.constant 0 : index
      %38 = vector.load %arg10[%c0_21, %c0_22] : memref<16x128xf32, #tpu.memory_space<vmem>>, vector<16x128xf32>
      tpu.vector_store %arg10[%c0_21, %c0_22], %37 {strides = array<i32>} : memref<16x128xf32, #tpu.memory_space<vmem>>, vector<16x128xf32>,
    } else {
    }
    %c9_i32 = arith.constant 9 : i32
    %9 = arith.cmpi eq, %arg1, %c9_i32 : i32
    %c0_i32_3 = arith.constant 0 : i32
    %10 = arith.cmpi eq, %arg2, %c0_i32_3 : i32
    %11 = arith.andi %9, %10 : i1
    %12 = arith.extui %11 : i1 to i32
    %c0_i32_4 = arith.constant 0 : i32
    %13 = arith.cmpi ne, %12, %c0_i32_4 : i32
    scf.if %13 {
      %c0_5 = arith.constant 0 : index
      %c0_6 = arith.constant 0 : index
      %14 = vector.load %arg10[%c0_5, %c0_6] : memref<16x128xf32, #tpu.memory_space<vmem>>, vector<16x128xf32>
      %c0_7 = arith.constant 0 : index
      %c0_8 = arith.constant 0 : index
      %15 = vector.load %arg9[%c0_7, %c0_8] : memref<16x128xf32, #tpu.memory_space<vmem>>, vector<16x128xf32>
      tpu.vector_store %arg9[%c0_7, %c0_8], %14 {strides = array<i32>} : memref<16x128xf32, #tpu.memory_space<vmem>>, vector<16x128xf32>,
    } else {
    }
    return
  }
  func.func @transform_0(%arg0: i32, %arg1: i32, %arg2: i32, %arg3: memref<1xi32, #tpu.memory_space<smem>>, %arg4: memref<10xi32, #tpu.memory_space<smem>>) -> (i32, i32) {
    %c0_i32 = arith.constant 0 : i32
    %c0_i32_0 = arith.constant 0 : i32
    return %arg0, %c0_i32 : i32, i32
  }
  func.func @transform_1(%arg0: i32, %arg1: i32, %arg2: i32, %arg3: memref<1xi32, #tpu.memory_space<smem>>, %arg4: memref<10xi32, #tpu.memory_space<smem>>) -> (i32, i32, i32) {
    %c0 = arith.constant 0 : index
    %0 = memref.load %arg3[%c0] : memref<1xi32, #tpu.memory_space<smem>>
    %1 = arith.cmpi slt, %arg1, %0 : i32
    %2 = arith.extui %1 : i1 to i32
    %3 = arith.index_cast %arg1 : i32 to index
    %4 = memref.load %arg4[%3] : memref<10xi32, #tpu.memory_space<smem>>
    %5 = arith.muli %arg2, %2 : i32
    %c1_i32 = arith.constant 1 : i32
    %6 = arith.subi %c1_i32, %2 : i32
    %c0_i32 = arith.constant 0 : i32
    %7 = arith.muli %c0_i32, %6 : i32
    %8 = arith.addi %5, %7 : i32
    %c0_i32_0 = arith.constant 0 : i32
    %c0_i32_1 = arith.constant 0 : i32
    return %4, %8, %c0_i32_0 : i32, i32, i32
  }
  func.func @transform_2(%arg0: i32, %arg1: i32, %arg2: i32, %arg3: memref<1xi32, #tpu.memory_space<smem>>, %arg4: memref<10xi32, #tpu.memory_space<smem>>) -> (i32, i32, i32) {
    %c0 = arith.constant 0 : index
    %0 = memref.load %arg3[%c0] : memref<1xi32, #tpu.memory_space<smem>>
    %1 = arith.cmpi slt, %arg1, %0 : i32
    %2 = arith.extui %1 : i1 to i32
    %3 = arith.index_cast %arg1 : i32 to index
    %4 = memref.load %arg4[%3] : memref<10xi32, #tpu.memory_space<smem>>
    %5 = arith.muli %arg2, %2 : i32
    %c1_i32 = arith.constant 1 : i32
    %6 = arith.subi %c1_i32, %2 : i32
    %c0_i32 = arith.constant 0 : i32
    %7 = arith.muli %c0_i32, %6 : i32
    %8 = arith.addi %5, %7 : i32
    %c0_i32_0 = arith.constant 0 : i32
    %c0_i32_1 = arith.constant 0 : i32
    return %4, %c0_i32_0, %8 : i32, i32, i32
  }
  func.func @transform_3(%arg0: i32, %arg1: i32, %arg2: i32, %arg3: memref<1xi32, #tpu.memory_space<smem>>, %arg4: memref<10xi32, #tpu.memory_space<smem>>) -> (i32, i32, i32) {
    %0 = arith.index_cast %arg1 : i32 to index
    %1 = memref.load %arg4[%0] : memref<10xi32, #tpu.memory_space<smem>>
    %c0_i32 = arith.constant 0 : i32
    %c0_i32_0 = arith.constant 0 : i32
    return %1, %arg0, %c0_i32 : i32, i32, i32
  }
  func.func @transform_4(%arg0: i32, %arg1: i32, %arg2: i32, %arg3: memref<1xi32, #tpu.memory_space<smem>>, %arg4: memref<10xi32, #tpu.memory_space<smem>>) -> (i32, i32) {
    %c0_i32 = arith.constant 0 : i32
    %c0_i32_0 = arith.constant 0 : i32
    return %arg0, %c0_i32 : i32, i32
  }
}

</mosaic_0001>

<llo_original>
// kernel: moe_forward.1
$region0: #{moe_forward.1}
  #allocation0 [shape = 'u32[]', space=smem, size = 0x4, offset = 0x4, fixed_abs, tag = 'smem constant byte address 0x4 - core index']
  #allocation1 [shape = 'u32[144,128]{1,0:T(1,128)}', space=vmem, size = 0x12000, scoped, tag = 'internal scratch']
  #allocation2 [shape = 'f32[16,128]{1,0:T(8,128)}', space=vmem, size = 0x2000, scoped, tag = 'scratch operand']
  #allocation3 [shape = 's32[1]{0}', space=sflag, size = 0x4, scoped, tag = 'scoped memory for moe_forward.1']
  #allocation4 [shape = 's32[1]{0:T(128)S(6)}', space=smem, size = 0x200, scoped, tag = 'prefetched SMEM operand 0']
  #allocation5 [shape = 'u8[512]{0}', space=smem, size = 0x200, scoped, tag = 'prefetched SMEM operand 1']
  %s0 = inlined_call_operand.<no memory space> [shape: s32[1], index: 0, kind: input, shape index: {}]
  %s1 = inlined_call_operand.vmem [shape: s32[10], index: 1, kind: input, shape index: {}]
  %s2 = inlined_call_operand.vmem [shape: bf16[16,128], index: 2, kind: input, shape index: {}]
  %s3 = inlined_call_operand.vmem [shape: bf16[10,256,128], index: 3, kind: input, shape index: {}]
  %s4 = inlined_call_operand.vmem [shape: bf16[10,128,128], index: 4, kind: input, shape index: {}]
  %s5 = inlined_call_operand.vmem [shape: f32[10,16,1], index: 5, kind: input, shape index: {}]
  %s6 = inlined_call_operand.vmem [shape: f32[16,128], index: 6, kind: output, shape index: {}]
  %s7 = sld [smem:[#allocation0]]
  $region61: #{moe_forward.1} parent=0
    _
  %s9 = ssub.s32 1, %s7
  %s10 = scalar_select 0, %s9, %s7
  %11 = sst [smem:[#allocation4]] %s0
  %s12 = sshll.u32 %s1, 4
  %s13 = int_to_ptr.vmem [resolvable:$true] %s12
  %15 = dma.vmem_to_smem %s13, 16, [#allocation5], [#allocation3]
  %16 = dma.done [#allocation3], 16
  %17 = sfence
  loop: start=0, step=1, limit=12
  $region2: #{moe_forward.1} parent=0 // loop_pre_header
    _
  $region3: #{moe_forward.1} parent=0 // loop_header
    %s19 = sphi 0, %s23
    %p20 = scmp.ge.s32.totalorder %s19, 12
    %s26 = sphi 0, %s45
    %s27 = sphi 0, %s41
    %s28 = sphi 0, %s37
    %s29 = sphi 0, %s26
    %s30 = sphi 0, %s27
    %s31 = sphi 0, %s28
    %s32 = sphi 0, %s29
    %s33 = sphi 0, %s30
    %s34 = sphi 0, %s31
    %s48 = sphi 0, %s50
    %s51 = sphi 0, %s48
    %s52 = sphi 0, %s51
    %s68 = sphi 0, %s52
    %s86 = sphi 0, %s88
    %s89 = sphi 0, %s86
    %s90 = sphi 0, %s89
    %s106 = sphi 0, %s90
    %s124 = sphi 0, %s126
    %s127 = sphi 0, %s124
    %s128 = sphi 0, %s127
    %s144 = sphi 0, %s128
    %s154 = sphi 0, %s156
    %s157 = sphi 0, %s154
    %s158 = sphi 0, %s157
    %s174 = sphi 0, %s158
    %s180 = sphi 0, %s182
    %s183 = sphi 0, %s180
    %s184 = sphi 0, %s183
    %s200 = sphi 0, %s184
  $region4: #{moe_forward.1} parent=0 // loop_header_branch
    %22 = sbr.rel (%p20) target = $region8
  $region5: #{moe_forward.1} parent=0 // loop_body
    %s24 = ssub.s32 %s19, 1
    %s25 = ssub.s32 %s19, 2
    %s35 = sadd.s32 1, %s28
    %p36 = scmp.ge.s32.totalorder %s35, 1
    %s37 = scalar_select %p36, 0, %s35
    %s38 = sadd.s32 1, %s27
    %s39 = scalar_select %p36, %s38, %s27
    %p40 = scmp.ge.s32.totalorder %s39, 10
    %s41 = scalar_select %p40, 0, %s39
    %s42 = sadd.s32 1, %s26
    %s43 = scalar_select %p40, %s42, %s26
    %p44 = scmp.ge.s32.totalorder %s43, 1
    %s45 = scalar_select %p44, 0, %s43
    %s46 = ssub.s32 %s26, %s45
    %p47 = scmp.eq.s32.totalorder %s46, 0
    %s49 = sadd.s32 %s48, 1
    %s50 = scalar_select %p47, %s48, %s49
    %p53 = pneg %p47
    %p54 = scmp.eq.s32.totalorder %s19, 9
    %p55 = por %p53, %p54
    %p56 = scmp.ne.s32.totalorder %s48, %s51
    %p57 = scmp.eq.s32.totalorder %s19, 0
    %p58 = por %p56, %p57
    %p59 = scmp.ne.s32.totalorder %s48, %s51
    %p60 = scmp.eq.s32.totalorder %s24, 9
    %p61 = por %p59, %p60
    %p62 = scmp.ne.s32.totalorder %s51, %s52
    %p63 = scmp.eq.s32.totalorder %s24, 0
    %p64 = por %p62, %p63
    %p65 = scmp.ne.s32.totalorder %s51, %s52
    %p66 = scmp.eq.s32.totalorder %s25, 9
    %p67 = por %p65, %p66
    %p69 = scmp.ne.s32.totalorder %s52, %s68
    %p70 = scmp.eq.s32.totalorder %s25, 0
    %p71 = por %p69, %p70
    %s72 = sld [smem:[#allocation4]]
    %p73 = scmp.lt.s32.totalorder %s27, %s72
    %s74 = scalar_select %p73, 1, 0
    %s75 = sld [smem:[#allocation5 + %s27]]
    %s76 = smul.u32 %s28, %s74
    %s77 = sld [smem:[#allocation4]]
    %p78 = scmp.lt.s32.totalorder %s41, %s77
    %s79 = scalar_select %p78, 1, 0
    %s80 = sld [smem:[#allocation5 + %s41]]
    %s81 = smul.u32 %s37, %s79
    %s82 = ssub.s32 %s75, %s80
    %s83 = ssub.s32 %s76, %s81
    %s84 = sor.u32 %s82, %s83
    %p85 = scmp.eq.s32.totalorder %s84, 0
    %s87 = sadd.s32 %s86, 1
    %s88 = scalar_select %p85, %s86, %s87
    %p91 = pneg %p85
    %p92 = scmp.eq.s32.totalorder %s19, 9
    %p93 = por %p91, %p92
    %p94 = scmp.ne.s32.totalorder %s86, %s89
    %p95 = scmp.eq.s32.totalorder %s19, 0
    %p96 = por %p94, %p95
    %p97 = scmp.ne.s32.totalorder %s86, %s89
    %p98 = scmp.eq.s32.totalorder %s24, 9
    %p99 = por %p97, %p98
    %p100 = scmp.ne.s32.totalorder %s89, %s90
    %p101 = scmp.eq.s32.totalorder %s24, 0
    %p102 = por %p100, %p101
    %p103 = scmp.ne.s32.totalorder %s89, %s90
    %p104 = scmp.eq.s32.totalorder %s25, 9
    %p105 = por %p103, %p104
    %p107 = scmp.ne.s32.totalorder %s90, %s106
    %p108 = scmp.eq.s32.totalorder %s25, 0
    %p109 = por %p107, %p108
    %s110 = sld [smem:[#allocation4]]
    %p111 = scmp.lt.s32.totalorder %s27, %s110
    %s112 = scalar_select %p111, 1, 0
    %s113 = sld [smem:[#allocation5 + %s27]]
    %s114 = smul.u32 %s28, %s112
    %s115 = sld [smem:[#allocation4]]
    %p116 = scmp.lt.s32.totalorder %s41, %s115
    %s117 = scalar_select %p116, 1, 0
    %s118 = sld [smem:[#allocation5 + %s41]]
    %s119 = smul.u32 %s37, %s117
    %s120 = ssub.s32 %s113, %s118
    %s121 = ssub.s32 %s114, %s119
    %s122 = sor.u32 %s120, %s121
    %p123 = scmp.eq.s32.totalorder %s122, 0
    %s125 = sadd.s32 %s124, 1
    %s126 = scalar_select %p123, %s124, %s125
    %p129 = pneg %p123
    %p130 = scmp.eq.s32.totalorder %s19, 9
    %p131 = por %p129, %p130
    %p132 = scmp.ne.s32.totalorder %s124, %s127
    %p133 = scmp.eq.s32.totalorder %s19, 0
    %p134 = por %p132, %p133
    %p135 = scmp.ne.s32.totalorder %s124, %s127
    %p136 = scmp.eq.s32.totalorder %s24, 9
    %p137 = por %p135, %p136
    %p138 = scmp.ne.s32.totalorder %s127, %s128
    %p139 = scmp.eq.s32.totalorder %s24, 0
    %p140 = por %p138, %p139
    %p141 = scmp.ne.s32.totalorder %s127, %s128
    %p142 = scmp.eq.s32.totalorder %s25, 9
    %p143 = por %p141, %p142
    %p145 = scmp.ne.s32.totalorder %s128, %s144
    %p146 = scmp.eq.s32.totalorder %s25, 0
    %p147 = por %p145, %p146
    %s148 = sld [smem:[#allocation5 + %s27]]
    %s149 = sld [smem:[#allocation5 + %s41]]
    %s150 = ssub.s32 %s148, %s149
    %s151 = ssub.s32 %s26, %s45
    %s152 = sor.u32 %s150, %s151
    %p153 = scmp.eq.s32.totalorder %s152, 0
    %s155 = sadd.s32 %s154, 1
    %s156 = scalar_select %p153, %s154, %s155
    %p159 = pneg %p153
    %p160 = scmp.eq.s32.totalorder %s19, 9
    %p161 = por %p159, %p160
    %p162 = scmp.ne.s32.totalorder %s154, %s157
    %p163 = scmp.eq.s32.totalorder %s19, 0
    %p164 = por %p162, %p163
    %p165 = scmp.ne.s32.totalorder %s154, %s157
    %p166 = scmp.eq.s32.totalorder %s24, 9
    %p167 = por %p165, %p166
    %p168 = scmp.ne.s32.totalorder %s157, %s158
    %p169 = scmp.eq.s32.totalorder %s24, 0
    %p170 = por %p168, %p169
    %p171 = scmp.ne.s32.totalorder %s157, %s158
    %p172 = scmp.eq.s32.totalorder %s25, 9
    %p173 = por %p171, %p172
    %p175 = scmp.ne.s32.totalorder %s158, %s174
    %p176 = scmp.eq.s32.totalorder %s25, 0
    %p177 = por %p175, %p176
    %s178 = ssub.s32 %s26, %s45
    %p179 = scmp.eq.s32.totalorder %s178, 0
    %s181 = sadd.s32 %s180, 1
    %s182 = scalar_select %p179, %s180, %s181
    %p185 = pneg %p179
    %p186 = scmp.eq.s32.totalorder %s19, 9
    %p187 = por %p185, %p186
    %p188 = scmp.ne.s32.totalorder %s180, %s183
    %p189 = scmp.eq.s32.totalorder %s19, 0
    %p190 = por %p188, %p189
    %p191 = scmp.ne.s32.totalorder %s180, %s183
    %p192 = scmp.eq.s32.totalorder %s24, 9
    %p193 = por %p191, %p192
    %p194 = scmp.ne.s32.totalorder %s183, %s184
    %p195 = scmp.eq.s32.totalorder %s24, 0
    %p196 = por %p194, %p195
    %p197 = scmp.ne.s32.totalorder %s183, %s184
    %p198 = scmp.eq.s32.totalorder %s25, 9
    %p199 = por %p197, %p198
    %p201 = scmp.ne.s32.totalorder %s184, %s200
    %p202 = scmp.eq.s32.totalorder %s25, 0
    %p203 = por %p201, %p202
    %p204 = scmp.le.s32.totalorder 1, %s19
    %p205 = scmp.lt.s32.totalorder %s19, 11
    %p206 = pnand %p204, %p205
    %p207 = pneg %p206
    // Predicated region
    $region9: #{moe_forward.1} parent=5 // pred_check
      _
    $region10: #{moe_forward.1} parent=5 // pred_check_branch
      %209 = sbr.rel (%p206) target = $region12
    $region11: #{moe_forward.1} parent=5 // pred_region
      %s210 = ssub.s32 %s19, 1
      // Predicated region
      $region13: #{moe_forward.1} parent=11 // pred_check
        %p211 = pneg %p64
      $region14: #{moe_forward.1} parent=11 // pred_check_branch
        %213 = sbr.rel (%p211) target = $region16
      $region15: #{moe_forward.1} parent=11 // pred_region
        %s214 = smul.u32 2, %s29
        %p215 = scmp.lt.s32.totalorder %s214, 1
        %s216 = scalar_select %p215, %s214, 1
        %s217 = smul.addr %s216, 4
        %s218 = scalar_lea.vmem %s2, %s217
        %s219 = smul.u32 2, %s29
      $region16: #{moe_forward.1} parent=11 // pred_fallthru
        _
    $region12: #{moe_forward.1} parent=5 // pred_fallthru
      _
    %p220 = scmp.lt.s32.totalorder %s19, 10
    // Predicated region
    $region17: #{moe_forward.1} parent=5 // pred_check
      %p221 = pneg %p220
    $region18: #{moe_forward.1} parent=5 // pred_check_branch
      %223 = sbr.rel (%p221) target = $region20
    $region19: #{moe_forward.1} parent=5 // pred_region
      // Predicated region
      $region21: #{moe_forward.1} parent=19 // pred_check
        %p224 = pneg %p96
      $region22: #{moe_forward.1} parent=19 // pred_check_branch
        %226 = sbr.rel (%p224) target = $region24
      $region23: #{moe_forward.1} parent=19 // pred_region
        %s227 = sld [smem:[#allocation4]]
        %p228 = scmp.lt.s32.totalorder %s27, %s227
        %s229 = scalar_select %p228, 1, 0
        %s230 = sld [smem:[#allocation5 + %s27]]
        %s231 = smul.u32 %s28, %s229
        %s232 = smul.u32 32, %s231
        %p233 = scmp.lt.s32.totalorder %s230, 9
        %s234 = scalar_select %p233, %s230, 9
        %p235 = scmp.lt.s32.totalorder %s232, 31
        %s236 = scalar_select %p235, %s232, 31
        %s237 = smul.addr %s234, 32
        %s238 = sadd.s32 %s236, %s237
        %s239 = smul.addr %s238, 4
        %s240 = scalar_lea.vmem %s3, %s239
        %s241 = sld [smem:[#allocation4]]
        %p242 = scmp.lt.s32.totalorder %s27, %s241
        %s243 = scalar_select %p242, 1, 0
        %s244 = sld [smem:[#allocation5 + %s27]]
        %s245 = smul.u32 %s28, %s243
        %s246 = smul.u32 32, %s245
      $region24: #{moe_forward.1} parent=19 // pred_fallthru
        _
      // Predicated region
      $region25: #{moe_forward.1} parent=19 // pred_check
        %p247 = pneg %p134
      $region26: #{moe_forward.1} parent=19 // pred_check_branch
        %249 = sbr.rel (%p247) target = $region28
      $region27: #{moe_forward.1} parent=19 // pred_region
        %s250 = sld [smem:[#allocation4]]
        %p251 = scmp.lt.s32.totalorder %s27, %s250
        %s252 = scalar_select %p251, 1, 0
        %s253 = sld [smem:[#allocation5 + %s27]]
        %s254 = smul.u32 %s28, %s252
        %p255 = scmp.lt.s32.totalorder %s253, 9
        %s256 = scalar_select %p255, %s253, 9
        %p257 = scmp.lt.s32.totalorder %s254, 0
        %s258 = scalar_select %p257, %s254, 0
        %s259 = smul.addr %s256, 16
        %s260 = sadd.s32 %s258, %s259
        %s261 = smul.addr %s260, 4
        %s262 = scalar_lea.vmem %s4, %s261
        %s263 = sld [smem:[#allocation4]]
        %p264 = scmp.lt.s32.totalorder %s27, %s263
        %s265 = scalar_select %p264, 1, 0
        %s266 = sld [smem:[#allocation5 + %s27]]
        %s267 = smul.u32 %s28, %s265
      $region28: #{moe_forward.1} parent=19 // pred_fallthru
        _
      // Predicated region
      $region29: #{moe_forward.1} parent=19 // pred_check
        %p268 = pneg %p164
      $region30: #{moe_forward.1} parent=19 // pred_check_branch
        %270 = sbr.rel (%p268) target = $region32
      $region31: #{moe_forward.1} parent=19 // pred_region
        %s271 = sld [smem:[#allocation5 + %s27]]
        %s272 = smul.u32 2, %s26
        %p273 = scmp.lt.s32.totalorder %s271, 9
        %s274 = scalar_select %p273, %s271, 9
        %p275 = scmp.lt.s32.totalorder %s272, 1
        %s276 = scalar_select %p275, %s272, 1
        %s277 = smul.addr %s274, 2
        %s278 = sadd.s32 %s276, %s277
        %s279 = smul.addr %s278, 8
        %s280 = scalar_lea.vmem %s5, %s279
        %s281 = sld [smem:[#allocation5 + %s27]]
        %s282 = smul.u32 2, %s26
      $region32: #{moe_forward.1} parent=19 // pred_fallthru
        _
    $region20: #{moe_forward.1} parent=5 // pred_fallthru
      _
    %p283 = scmp.le.s32.totalorder 1, %s19
    %p284 = scmp.lt.s32.totalorder %s19, 11
    %p285 = pnand %p283, %p284
    %p286 = pneg %p285
    // Predicated region
    $region33: #{moe_forward.1} parent=5 // pred_check
      _
    $region34: #{moe_forward.1} parent=5 // pred_check_branch
      %288 = sbr.rel (%p285) target = $region36
    $region35: #{moe_forward.1} parent=5 // pred_region
      %s289 = ssub.s32 %s19, 1
      %s290 = smul.u32 2, %s29
      %p291 = scmp.lt.s32.totalorder %s290, 1
      %s292 = scalar_select %p291, %s290, 1
      %s293 = smul.addr %s292, 4
      %s294 = scalar_lea.vmem %s2, %s293
      %p295 = pneg %p64
      %p296 = pneg %p61
      %s297 = sld [smem:[#allocation4]]
      %p298 = scmp.lt.s32.totalorder %s30, %s297
      %s299 = scalar_select %p298, 1, 0
      %s300 = sld [smem:[#allocation5 + %s30]]
      %s301 = smul.u32 %s31, %s299
      %s302 = smul.u32 32, %s301
      %p303 = scmp.lt.s32.totalorder %s300, 9
      %s304 = scalar_select %p303, %s300, 9
      %p305 = scmp.lt.s32.totalorder %s302, 31
      %s306 = scalar_select %p305, %s302, 31
      %s307 = smul.addr %s304, 32
      %s308 = sadd.s32 %s306, %s307
      %s309 = smul.addr %s308, 4
      %s310 = scalar_lea.vmem %s3, %s309
      %p311 = pneg %p102
      %p312 = pneg %p99
      %s313 = sld [smem:[#allocation4]]
      %p314 = scmp.lt.s32.totalorder %s30, %s313
      %s315 = scalar_select %p314, 1, 0
      %s316 = sld [smem:[#allocation5 + %s30]]
      %s317 = smul.u32 %s31, %s315
      %p318 = scmp.lt.s32.totalorder %s316, 9
      %s319 = scalar_select %p318, %s316, 9
      %p320 = scmp.lt.s32.totalorder %s317, 0
      %s321 = scalar_select %p320, %s317, 0
      %s322 = smul.addr %s319, 16
      %s323 = sadd.s32 %s321, %s322
      %s324 = smul.addr %s323, 4
      %s325 = scalar_lea.vmem %s4, %s324
      %p326 = pneg %p140
      %p327 = pneg %p137
      %s328 = sld [smem:[#allocation5 + %s30]]
      %s329 = smul.u32 2, %s29
      %p330 = scmp.lt.s32.totalorder %s328, 9
      %s331 = scalar_select %p330, %s328, 9
      %p332 = scmp.lt.s32.totalorder %s329, 1
      %s333 = scalar_select %p332, %s329, 1
      %s334 = smul.addr %s331, 2
      %s335 = sadd.s32 %s333, %s334
      %s336 = smul.addr %s335, 8
      %s337 = scalar_lea.vmem %s5, %s336
      %p338 = pneg %p170
      %p339 = pneg %p167
      %p340 = pneg %p196
      %p341 = pneg %p193
      %s342 = smul.u32 2, %s29
      %p343 = scmp.lt.s32.totalorder %s342, 1
      %s344 = scalar_select %p343, %s342, 1
      %s345 = smul.addr %s344, 8
      %s346 = scalar_lea.vmem %s6, %s345
      %s347 = smul.u32 2, %s29
      %p348 = scmp.lt.s32.totalorder %s347, 1
      %s349 = scalar_select %p348, %s347, 1
      %s350 = smul.addr %s349, 4
      %s351 = scalar_lea.vmem %s2, %s350
      %s352 = smul.u32 2, %s29
      %s353 = sld [smem:[#allocation4]]
      %p354 = scmp.lt.s32.totalorder %s30, %s353
      %s355 = scalar_select %p354, 1, 0
      %s356 = sld [smem:[#allocation5 + %s30]]
      %s357 = smul.u32 %s31, %s355
      %s358 = smul.u32 32, %s357
      %p359 = scmp.lt.s32.totalorder %s356, 9
      %s360 = scalar_select %p359, %s356, 9
      %p361 = scmp.lt.s32.totalorder %s358, 31
      %s362 = scalar_select %p361, %s358, 31
      %s363 = smul.addr %s360, 32
      %s364 = sadd.s32 %s362, %s363
      %s365 = smul.addr %s364, 4
      %s366 = scalar_lea.vmem %s3, %s365
      %s367 = sld [smem:[#allocation4]]
      %p368 = scmp.lt.s32.totalorder %s30, %s367
      %s369 = scalar_select %p368, 1, 0
      %s370 = sld [smem:[#allocation5 + %s30]]
      %s371 = smul.u32 %s31, %s369
      %s372 = smul.u32 32, %s371
      %s373 = sld [smem:[#allocation4]]
      %p374 = scmp.lt.s32.totalorder %s30, %s373
      %s375 = scalar_select %p374, 1, 0
      %s376 = sld [smem:[#allocation5 + %s30]]
      %s377 = smul.u32 %s31, %s375
      %p378 = scmp.lt.s32.totalorder %s376, 9
      %s379 = scalar_select %p378, %s376, 9
      %p380 = scmp.lt.s32.totalorder %s377, 0
      %s381 = scalar_select %p380, %s377, 0
      %s382 = smul.addr %s379, 16
      %s383 = sadd.s32 %s381, %s382
      %s384 = smul.addr %s383, 4
      %s385 = scalar_lea.vmem %s4, %s384
      %s386 = sld [smem:[#allocation4]]
      %p387 = scmp.lt.s32.totalorder %s30, %s386
      %s388 = scalar_select %p387, 1, 0
      %s389 = sld [smem:[#allocation5 + %s30]]
      %s390 = smul.u32 %s31, %s388
      %s391 = sld [smem:[#allocation5 + %s30]]
      %s392 = smul.u32 2, %s29
      %p393 = scmp.lt.s32.totalorder %s391, 9
      %s394 = scalar_select %p393, %s391, 9
      %p395 = scmp.lt.s32.totalorder %s392, 1
      %s396 = scalar_select %p395, %s392, 1
      %s397 = smul.addr %s394, 2
      %s398 = sadd.s32 %s396, %s397
      %s399 = smul.addr %s398, 8
      %s400 = scalar_lea.vmem %s5, %s399
      %s401 = sld [smem:[#allocation5 + %s30]]
      %s402 = smul.u32 2, %s29
      %s403 = smul.u32 2, %s29
      %p404 = scmp.lt.s32.totalorder %s403, 1
      %s405 = scalar_select %p404, %s403, 1
      %s406 = smul.addr %s405, 8
      %s407 = scalar_lea.vmem %s6, %s406
      %s408 = smul.u32 2, %s29
      %p410 = scmp.eq.s32.totalorder %s30, 0
      %p411 = scmp.eq.s32.totalorder %s31, 0
      %p412 = pnand %p410, %p411
      %p413 = pneg %p412
      // Predicated region
      $region37: #{moe_forward.1} parent=35 // pred_check
        _
      $region38: #{moe_forward.1} parent=35 // pred_check_branch
        %415 = sbr.rel (%p412) target = $region40
      $region39: #{moe_forward.1} parent=35 // pred_region
        %416 = vst [vmem:[#allocation2] sm:$0xff] 0.0
        %417 = vst [vmem:[#allocation2 + $0x8] sm:$0xff] 0.0
      $region40: #{moe_forward.1} parent=35 // pred_fallthru
        _
      %s418 = sld [smem:[#allocation4]]
      %p419 = scmp.lt.s32.totalorder %s30, %s418
      // Predicated region
      $region41: #{moe_forward.1} parent=35 // pred_check
        %p420 = pneg %p419
      $region42: #{moe_forward.1} parent=35 // pred_check_branch
        %422 = sbr.rel (%p420) target = $region44
      $region43: #{moe_forward.1} parent=35 // pred_region
        %v423 = vld [vmem:[%s351] sm:$0xf]
        %v424 = vld [vmem:[%s351 + $0x4] sm:$0xf]
        %v425 = vld [vmem:[%s366] sm:$0xf]
        %v426 = vld [vmem:[%s366 + $0x4] sm:$0xf]
        %v427 = vld [vmem:[%s366 + $0x8] sm:$0xf]
        %v428 = vld [vmem:[%s366 + $0xc] sm:$0xf]
        %v429 = vld [vmem:[%s366 + $0x10] sm:$0xf]
        %v430 = vld [vmem:[%s366 + $0x14] sm:$0xf]
        %v431 = vld [vmem:[%s366 + $0x18] sm:$0xf]
        %v432 = vld [vmem:[%s366 + $0x1c] sm:$0xf]
        %v433 = vld [vmem:[%s366 + $0x20] sm:$0xf]
        %v434 = vld [vmem:[%s366 + $0x24] sm:$0xf]
        %v435 = vld [vmem:[%s366 + $0x28] sm:$0xf]
        %v436 = vld [vmem:[%s366 + $0x2c] sm:$0xf]
        %v437 = vld [vmem:[%s366 + $0x30] sm:$0xf]
        %v438 = vld [vmem:[%s366 + $0x34] sm:$0xf]
        %v439 = vld [vmem:[%s366 + $0x38] sm:$0xf]
        %v440 = vld [vmem:[%s366 + $0x3c] sm:$0xf]
        %v441 = vld [vmem:[%s366 + $0x40] sm:$0xf]
        %v442 = vld [vmem:[%s366 + $0x44] sm:$0xf]
        %v443 = vld [vmem:[%s366 + $0x48] sm:$0xf]
        %v444 = vld [vmem:[%s366 + $0x4c] sm:$0xf]
        %v445 = vld [vmem:[%s366 + $0x50] sm:$0xf]
        %v446 = vld [vmem:[%s366 + $0x54] sm:$0xf]
        %v447 = vld [vmem:[%s366 + $0x58] sm:$0xf]
        %v448 = vld [vmem:[%s366 + $0x5c] sm:$0xf]
        %v449 = vld [vmem:[%s366 + $0x60] sm:$0xf]
        %v450 = vld [vmem:[%s366 + $0x64] sm:$0xf]
        %v451 = vld [vmem:[%s366 + $0x68] sm:$0xf]
        %v452 = vld [vmem:[%s366 + $0x6c] sm:$0xf]
        %v453 = vld [vmem:[%s366 + $0x70] sm:$0xf]
        %v454 = vld [vmem:[%s366 + $0x74] sm:$0xf]
        %v455 = vld [vmem:[%s366 + $0x78] sm:$0xf]
        %v456 = vld [vmem:[%s366 + $0x7c] sm:$0xf]
        %v457 = vld [vmem:[%s385] sm:$0xf]
        %v458 = vld [vmem:[%s385 + $0x4] sm:$0xf]
        %v459 = vld [vmem:[%s385 + $0x8] sm:$0xf]
        %v460 = vld [vmem:[%s385 + $0xc] sm:$0xf]
        %v461 = vld [vmem:[%s385 + $0x10] sm:$0xf]
        %v462 = vld [vmem:[%s385 + $0x14] sm:$0xf]
        %v463 = vld [vmem:[%s385 + $0x18] sm:$0xf]
        %v464 = vld [vmem:[%s385 + $0x1c] sm:$0xf]
        %v465 = vld [vmem:[%s385 + $0x20] sm:$0xf]
        %v466 = vld [vmem:[%s385 + $0x24] sm:$0xf]
        %v467 = vld [vmem:[%s385 + $0x28] sm:$0xf]
        %v468 = vld [vmem:[%s385 + $0x2c] sm:$0xf]
        %v469 = vld [vmem:[%s385 + $0x30] sm:$0xf]
        %v470 = vld [vmem:[%s385 + $0x34] sm:$0xf]
        %v471 = vld [vmem:[%s385 + $0x38] sm:$0xf]
        %v472 = vld [vmem:[%s385 + $0x3c] sm:$0xf]
        %v475 = vunpack.c.l.b16 %v423
        %v476 = vunpack.c.l.b16 %v424
        %v477 = vpack.c.b16 %v476, %v475
        %v511 = vunpack.c.l.b16 %v425
        %v512 = vunpack.c.l.b16 %v426
        %v513 = vunpack.c.l.b16 %v427
        %v514 = vunpack.c.l.b16 %v428
        %v515 = vunpack.c.l.b16 %v429
        %v516 = vunpack.c.l.b16 %v430
        %v517 = vunpack.c.l.b16 %v431
        %v518 = vunpack.c.l.b16 %v432
        %v519 = vunpack.c.l.b16 %v433
        %v520 = vunpack.c.l.b16 %v434
        %v521 = vunpack.c.l.b16 %v435
        %v522 = vunpack.c.l.b16 %v436
        %v523 = vunpack.c.l.b16 %v437
        %v524 = vunpack.c.l.b16 %v438
        %v525 = vunpack.c.l.b16 %v439
        %v526 = vunpack.c.l.b16 %v440
        %v527 = vunpack.c.l.b16 %v441
        %v528 = vunpack.c.l.b16 %v442
        %v529 = vunpack.c.l.b16 %v443
        %v530 = vunpack.c.l.b16 %v444
        %v531 = vunpack.c.l.b16 %v445
        %v532 = vunpack.c.l.b16 %v446
        %v533 = vunpack.c.l.b16 %v447
        %v534 = vunpack.c.l.b16 %v448
        %v535 = vunpack.c.l.b16 %v449
        %v536 = vunpack.c.l.b16 %v450
        %v537 = vunpack.c.l.b16 %v451
        %v538 = vunpack.c.l.b16 %v452
        %v539 = vunpack.c.l.b16 %v453
        %v540 = vunpack.c.l.b16 %v454
        %v541 = vunpack.c.l.b16 %v455
        %v542 = vunpack.c.l.b16 %v456
        %v543 = vpack.c.b16 %v512, %v511
        %v544 = vpack.c.b16 %v514, %v513
        %v545 = vpack.c.b16 %v516, %v515
        %v546 = vpack.c.b16 %v518, %v517
        %v547 = vpack.c.b16 %v520, %v519
        %v548 = vpack.c.b16 %v522, %v521
        %v549 = vpack.c.b16 %v524, %v523
        %v550 = vpack.c.b16 %v526, %v525
        %v551 = vpack.c.b16 %v528, %v527
        %v552 = vpack.c.b16 %v530, %v529
        %v553 = vpack.c.b16 %v532, %v531
        %v554 = vpack.c.b16 %v534, %v533
        %v555 = vpack.c.b16 %v536, %v535
        %v556 = vpack.c.b16 %v538, %v537
        %v557 = vpack.c.b16 %v540, %v539
        %v558 = vpack.c.b16 %v542, %v541
        %575 = vmatprep.subr.bf16.mxu0 0
        %576 = vmatpush1.bf16.xpose.msra.mxu0 %v543
        %577 = vmatprep.subr.bf16.mxu0 0
        %578 = vmatpush1.bf16.xpose.msra.mxu0 %v544
        %579 = vmatprep.subr.bf16.mxu0 0
        %580 = vmatpush1.bf16.xpose.msra.mxu0 %v545
        %581 = vmatprep.subr.bf16.mxu0 0
        %582 = vmatpush1.bf16.xpose.msra.mxu0 %v546
        %583 = vmatprep.subr.bf16.mxu0 0
        %584 = vmatpush1.bf16.xpose.msra.mxu0 %v547
        %585 = vmatprep.subr.bf16.mxu0 0
        %586 = vmatpush1.bf16.xpose.msra.mxu0 %v548
        %587 = vmatprep.subr.bf16.mxu0 0
        %588 = vmatpush1.bf16.xpose.msra.mxu0 %v549
        %589 = vmatprep.subr.bf16.mxu0 0
        %590 = vmatpush1.bf16.xpose.msra.mxu0 %v550
        %591 = vmatprep.subr.bf16.mxu0 0
        %592 = vmatpush1.bf16.xpose.msra.mxu0 %v551
        %593 = vmatprep.subr.bf16.mxu0 0
        %594 = vmatpush1.bf16.xpose.msra.mxu0 %v552
        %595 = vmatprep.subr.bf16.mxu0 0
        %596 = vmatpush1.bf16.xpose.msra.mxu0 %v553
        %597 = vmatprep.subr.bf16.mxu0 0
        %598 = vmatpush1.bf16.xpose.msra.mxu0 %v554
        %599 = vmatprep.subr.bf16.mxu0 0
        %600 = vmatpush1.bf16.xpose.msra.mxu0 %v555
        %601 = vmatprep.subr.bf16.mxu0 0
        %602 = vmatpush1.bf16.xpose.msra.mxu0 %v556
        %603 = vmatprep.subr.bf16.mxu0 0
        %604 = vmatpush1.bf16.xpose.msra.mxu0 %v557
        %605 = vmatprep.subr.bf16.mxu0 0
        %606 = vmatpush1.bf16.xpose.msra.mxu0 %v558
        %607 = vmatprep.mubr.bf16.mxu0 0
        %608 = vmatmul.mubr.bf16.gmra.mrb[0].mxu0 %v477
        %v609 = vpop.f32.mrb[0].mxu0
        %v610 = vadd.f32 0.0, %v609
        %v611 = vpop.f32.mrb[0].mxu0
        %v612 = vadd.f32 0.0, %v611
        %v613 = vpop.f32.mrb[0].mxu0
        %v614 = vadd.f32 0.0, %v613
        %v615 = vpop.f32.mrb[0].mxu0
        %v616 = vadd.f32 0.0, %v615
        %617 = vdwg.mxu0
        %v618 = vsub.f32 0.0, %v610
        %v619 = vsub.f32 0.0, %v614
        %v620 = vmul.f32 %v618, 1.442695
        %v621 = vpow.pop %v620
        %v622 = vmul.f32 %v619, 1.442695
        %v623 = vpow.pop %v622
        %v624 = vadd.f32 %v621, 1.0
        %v625 = vadd.f32 %v623, 1.0
        %v626 = vrcp.pop %v624
        %v627 = vrcp.pop %v625
        %v628 = vmul.f32 %v610, %v626
        %v629 = vmul.f32 %v614, %v627
        %v630 = vmul.f32 %v628, %v612
        %v631 = vmul.f32 %v629, %v616
        %v632 = vld [vmem:[%s400] sm:$0xff]
        %v633 = vld [vmem:[%s400 + $0x8] sm:$0xff]
        %635 = vset.pattern.permute.xlu0 0
        %636 = vperm.xlu0 %635, %v632
        %v637 = vpop.permute.xlu0 %636
        %640 = vset.pattern.permute.xlu0 0
        %641 = vperm.xlu0 %640, %v633
        %v642 = vpop.permute.xlu0 %641
        %v644 = vmul.f32 %v630, %v637
        %v645 = vmul.f32 %v631, %v642
        %v646 = vpack.c.bf16 %v645, %v644
        %v647 = vld [vmem:[#allocation2] sm:$0xff]
        %v648 = vld [vmem:[#allocation2 + $0x8] sm:$0xff]
        %v665 = vunpack.c.l.b16 %v457
        %v666 = vunpack.c.l.b16 %v458
        %v667 = vunpack.c.l.b16 %v459
        %v668 = vunpack.c.l.b16 %v460
        %v669 = vunpack.c.l.b16 %v461
        %v670 = vunpack.c.l.b16 %v462
        %v671 = vunpack.c.l.b16 %v463
        %v672 = vunpack.c.l.b16 %v464
        %v673 = vunpack.c.l.b16 %v465
        %v674 = vunpack.c.l.b16 %v466
        %v675 = vunpack.c.l.b16 %v467
        %v676 = vunpack.c.l.b16 %v468
        %v677 = vunpack.c.l.b16 %v469
        %v678 = vunpack.c.l.b16 %v470
        %v679 = vunpack.c.l.b16 %v471
        %v680 = vunpack.c.l.b16 %v472
        %v681 = vpack.c.b16 %v666, %v665
        %v682 = vpack.c.b16 %v668, %v667
        %v683 = vpack.c.b16 %v670, %v669
        %v684 = vpack.c.b16 %v672, %v671
        %v685 = vpack.c.b16 %v674, %v673
        %v686 = vpack.c.b16 %v676, %v675
        %v687 = vpack.c.b16 %v678, %v677
        %v688 = vpack.c.b16 %v680, %v679
        %697 = vmatprep.subr.bf16.mxu0 0
        %698 = vmatpush1.bf16.xpose.msra.mxu0 %v681
        %699 = vmatprep.subr.bf16.mxu0 0
        %700 = vmatpush1.bf16.xpose.msra.mxu0 %v682
        %701 = vmatprep.subr.bf16.mxu0 0
        %702 = vmatpush1.bf16.xpose.msra.mxu0 %v683
        %703 = vmatprep.subr.bf16.mxu0 0
        %704 = vmatpush1.bf16.xpose.msra.mxu0 %v684
        %705 = vmatprep.subr.bf16.mxu0 0
        %706 = vmatpush1.bf16.xpose.msra.mxu0 %v685
        %707 = vmatprep.subr.bf16.mxu0 0
        %708 = vmatpush1.bf16.xpose.msra.mxu0 %v686
        %709 = vmatprep.subr.bf16.mxu0 0
        %710 = vmatpush1.bf16.xpose.msra.mxu0 %v687
        %711 = vmatprep.subr.bf16.mxu0 0
        %712 = vmatpush1.bf16.xpose.msra.mxu0 %v688
        %713 = vmatprep.subr.bf16.mxu0 0
        %714 = vmatpush1.bf16.xpose.msra.mxu0 0
        %715 = vmatprep.subr.bf16.mxu0 0
        %716 = vmatpush1.bf16.xpose.msra.mxu0 0
        %717 = vmatprep.subr.bf16.mxu0 0
        %718 = vmatpush1.bf16.xpose.msra.mxu0 0
        %719 = vmatprep.subr.bf16.mxu0 0
        %720 = vmatpush1.bf16.xpose.msra.mxu0 0
        %721 = vmatprep.subr.bf16.mxu0 0
        %722 = vmatpush1.bf16.xpose.msra.mxu0 0
        %723 = vmatprep.subr.bf16.mxu0 0
        %724 = vmatpush1.bf16.xpose.msra.mxu0 0
        %725 = vmatprep.subr.bf16.mxu0 0
        %726 = vmatpush1.bf16.xpose.msra.mxu0 0
        %727 = vmatprep.subr.bf16.mxu0 0
        %728 = vmatpush1.bf16.xpose.msra.mxu0 0
        %729 = vmatprep.mubr.bf16.mxu0 0
        %730 = vmatmul.mubr.bf16.gmra.mrb[0].mxu0 %v646
        %v731 = vpop.f32.mrb[0].mxu0
        %v732 = vadd.f32 0.0, %v731
        %v733 = vpop.f32.mrb[0].mxu0
        %v734 = vpop.f32.mrb[0].mxu0
        %v735 = vadd.f32 0.0, %v734
        %v736 = vpop.f32.mrb[0].mxu0
        %737 = vdwg.mxu0
        %v738 = vadd.f32 %v647, %v732
        %v739 = vadd.f32 %v648, %v735
        %740 = vst [vmem:[#allocation2] sm:$0xff] %v738
        %741 = vst [vmem:[#allocation2 + $0x8] sm:$0xff] %v739
      $region44: #{moe_forward.1} parent=35 // pred_fallthru
        _
      %p742 = scmp.eq.s32.totalorder %s30, 9
      %p743 = pnand %p742, %p411
      %p744 = pneg %p743
      // Predicated region
      $region45: #{moe_forward.1} parent=35 // pred_check
        _
      $region46: #{moe_forward.1} parent=35 // pred_check_branch
        %746 = sbr.rel (%p743) target = $region48
      $region47: #{moe_forward.1} parent=35 // pred_region
        %v747 = vld [vmem:[#allocation2] sm:$0xff]
        %v748 = vld [vmem:[#allocation2 + $0x8] sm:$0xff]
        %749 = vst [vmem:[%s407] sm:$0xff] %v747
        %750 = vst [vmem:[%s407 + $0x8] sm:$0xff] %v748
      $region48: #{moe_forward.1} parent=35 // pred_fallthru
        _
      %s751 = smul.u32 2, %s29
      %p752 = scmp.lt.s32.totalorder %s751, 1
      %s753 = scalar_select %p752, %s751, 1
      %s754 = smul.addr %s753, 8
      %s755 = scalar_lea.vmem %s6, %s754
      // Predicated region
      $region49: #{moe_forward.1} parent=35 // pred_check
        %p756 = pneg %p193
      $region50: #{moe_forward.1} parent=35 // pred_check_branch
        %758 = sbr.rel (%p756) target = $region52
      $region51: #{moe_forward.1} parent=35 // pred_region
        %s759 = smul.u32 2, %s29
      $region52: #{moe_forward.1} parent=35 // pred_fallthru
        _
      // Predicated region
      $region53: #{moe_forward.1} parent=35 // pred_check
        %p760 = pneg %p193
      $region54: #{moe_forward.1} parent=35 // pred_check_branch
        %762 = sbr.rel (%p760) target = $region56
      $region55: #{moe_forward.1} parent=35 // pred_region
        %s763 = smul.u32 2, %s29
        %p764 = scmp.lt.s32.totalorder %s763, 1
        %s765 = scalar_select %p764, %s763, 1
        %s766 = smul.addr %s765, 8
        %s767 = scalar_lea.vmem %s6, %s766
      $region56: #{moe_forward.1} parent=35 // pred_fallthru
        _
    $region36: #{moe_forward.1} parent=5 // pred_fallthru
      _
    %p768 = scmp.le.s32.totalorder 2, %s19
    // Predicated region
    $region57: #{moe_forward.1} parent=5 // pred_check
      %p769 = pneg %p768
    $region58: #{moe_forward.1} parent=5 // pred_check_branch
      %771 = sbr.rel (%p769) target = $region60
    $region59: #{moe_forward.1} parent=5 // pred_region
      %s772 = ssub.s32 %s19, 2
    $region60: #{moe_forward.1} parent=5 // pred_fallthru
      _
  $region6: #{moe_forward.1} parent=0 // loop_footer
    %s23 = sadd.s32 1, %s19
  $region7: #{moe_forward.1} parent=0 // loop_footer_branch
    %18 = sbr.rel target = $region3
  $region8: #{moe_forward.1} parent=0 // loop_exit
    _

</llo_original>
